<compile_context>
chip_gen: v7x
topology: tpu7x:2x2x1
jax: 0.10.0
libtpu: 0.0.40
codegen_flags: <defaults>
</compile_context>

<pallas_src>
import functools

import jax
import jax.numpy as jnp
from jax.experimental import pallas as pl
from jax.experimental.pallas import tpu as pltpu

EPS = 1e-8       # torch.cosine_similarity default eps
LANES = 128


def _cosine_pass_kernel(pre_ref, cur_ref, r_ref, tmax_ref, *, hw, rows,
                        needs_mask):
    """Per (batch, spatial tile): cosine similarity over channels + tile max."""
    pre = pre_ref[...].astype(jnp.float32)            # (1, C, rows, 128)
    cur = cur_ref[...].astype(jnp.float32)

    # Channel reduction over a non-minor axis: C-1 cheap VPU adds on fully
    # packed (rows, 128) slabs.
    num = jnp.sum(pre * cur, axis=1)                  # (1, rows, 128)
    n2p = jnp.sum(pre * pre, axis=1)
    n2c = jnp.sum(cur * cur, axis=1)

    # num / max(|p|*|c|, eps) == num * rsqrt(max(|p|^2*|c|^2, eps^2))
    r = num * jax.lax.rsqrt(jnp.maximum(n2p * n2c, EPS * EPS))
    r_ref[...] = r

    if needs_mask:
        # Exclude zero-padded spatial positions from the max.
        row = jax.lax.broadcasted_iota(jnp.int32, (1, rows, LANES), 1)
        col = jax.lax.broadcasted_iota(jnp.int32, (1, rows, LANES), 2)
        flat = (pl.program_id(1) * rows + row) * LANES + col
        r_for_max = jnp.where(flat < hw, r, -jnp.inf)
    else:
        r_for_max = r
    tmax = jnp.max(r_for_max)
    tmax_ref[...] = jnp.broadcast_to(tmax, tmax_ref.shape)


def _blend_kernel(rmax_ref, cur_ref, hid_ref, r_ref, out_ref):
    """out = cur + exp(r - r_max) * (hid - cur), sim broadcast over channels."""
    rmax = rmax_ref[pl.program_id(0)]                 # f32 scalar from SMEM
    cur = cur_ref[...].astype(jnp.float32)            # (1, C, rows, 128)
    hid = hid_ref[...].astype(jnp.float32)
    sim = jnp.exp(r_ref[...] - rmax)                  # (1, rows, 128)
    sim = sim[:, None, :, :]                          # broadcast over C
    out_ref[...] = (cur + sim * (hid - cur)).astype(out_ref.dtype)


def _spatial_tile_rows(C, G, itemsize, budget_bytes=512 * 1024):
    """Rows of 128 lanes per spatial tile: biggest multiple of 8 within budget."""
    rows = budget_bytes // (C * LANES * itemsize)
    rows = max(8, (rows // 8) * 8)
    if rows >= G:
        return G            # single spatial tile; block dim == full array dim
    return rows


@jax.jit
def template_matching(pre_key, cur_key, hidden):
    """pre_key, cur_key, hidden: (B, C, H, W) -> (B, C, H, W)."""
    B, C, H, W = pre_key.shape
    HW = H * W
    G = pl.cdiv(HW, LANES)
    itemsize = jnp.dtype(cur_key.dtype).itemsize
    rows = _spatial_tile_rows(C, G, itemsize)
    n_tiles = pl.cdiv(G, rows)
    G_pad = n_tiles * rows
    HW_pad = G_pad * LANES
    needs_mask = HW_pad != HW

    def relayout(x):
        x = x.reshape(B, C, HW)
        if HW_pad != HW:
            x = jnp.pad(x, ((0, 0), (0, 0), (0, HW_pad - HW)))
        return x.reshape(B, C, G_pad, LANES)

    pre = relayout(pre_key)
    cur = relayout(cur_key)
    hid = relayout(hidden)

    # ---- pass 1: cosine similarity r + per-tile max --------------------------
    key_spec = pl.BlockSpec((1, C, rows, LANES), lambda b, j: (b, 0, j, 0))
    r_spec = pl.BlockSpec((1, rows, LANES), lambda b, j: (b, j, 0))
    tmax_spec = pl.BlockSpec((1, 1, 8, LANES), lambda b, j: (b, j, 0, 0))

    r, tile_max = pl.pallas_call(
        functools.partial(_cosine_pass_kernel, hw=HW, rows=rows,
                          needs_mask=needs_mask),
        out_shape=(
            jax.ShapeDtypeStruct((B, G_pad, LANES), jnp.float32),
            jax.ShapeDtypeStruct((B, n_tiles, 8, LANES), jnp.float32),
        ),
        grid_spec=pltpu.PrefetchScalarGridSpec(
            num_scalar_prefetch=0,
            grid=(B, n_tiles),
            in_specs=[key_spec, key_spec],
            out_specs=(r_spec, tmax_spec),
        ),
        compiler_params=pltpu.CompilerParams(
            dimension_semantics=("parallel", "parallel")),
    )(pre, cur)

    # Tiny global reduction (B * n_tiles * 8 * 128 elems) done by XLA.
    r_max = jnp.max(tile_max, axis=(1, 2, 3))          # (B,), float32

    # ---- pass 2: sim = exp(r - r_max), blend ---------------------------------
    key_spec2 = pl.BlockSpec((1, C, rows, LANES), lambda b, j, rm: (b, 0, j, 0))
    r_spec2 = pl.BlockSpec((1, rows, LANES), lambda b, j, rm: (b, j, 0))

    out = pl.pallas_call(
        _blend_kernel,
        out_shape=jax.ShapeDtypeStruct((B, C, G_pad, LANES), cur_key.dtype),
        grid_spec=pltpu.PrefetchScalarGridSpec(
            num_scalar_prefetch=1,                     # r_max -> SMEM
            grid=(B, n_tiles),
            in_specs=[key_spec2, key_spec2, r_spec2],
            out_specs=key_spec2,
        ),
        compiler_params=pltpu.CompilerParams(
            dimension_semantics=("parallel", "parallel")),
    )(r_max, cur, hid, r)

    out = out.reshape(B, C, HW_pad)[:, :, :HW]
    return out.reshape(B, C, H, W)


def template_matching_ref(pre_key, cur_key, hidden):
    """Plain-JAX reference mirroring the PyTorch forward."""
    B, C, H, W = pre_key.shape
    p = pre_key.reshape(B, C, H * W).astype(jnp.float32)
    c = cur_key.reshape(B, C, H * W).astype(jnp.float32)
    num = jnp.sum(p * c, axis=1)
    denom = jnp.maximum(
        jnp.linalg.norm(p, axis=1) * jnp.linalg.norm(c, axis=1), EPS)
    sim = jnp.exp(num / denom)
    sim = sim / jnp.max(sim, axis=-1, keepdims=True)
    sim = sim.reshape(B, 1, H, W)
    return cur_key * (1.0 - sim) + sim * hidden


if __name__ == "__main__":
    # Small shapes consistent with the module's forward: (B, C_key, H, W)
    B, C, H, W = 2, 4, 16, 16
    key = jax.random.PRNGKey(0)
    k1, k2, k3 = jax.random.split(key, 3)
    pre_key = jax.random.normal(k1, (B, C, H, W), dtype=jnp.float32)
    cur_key = jax.random.normal(k2, (B, C, H, W), dtype=jnp.float32)
    hidden = jax.random.normal(k3, (B, C, H, W), dtype=jnp.float32)

    out = jax.block_until_ready(template_matching(pre_key, cur_key, hidden))
    ref = template_matching_ref(pre_key, cur_key, hidden)

    assert out.shape == (B, C, H, W)
    assert jnp.allclose(out, ref, atol=1e-5, rtol=1e-5), "mismatch vs reference"

    print("KERNEL_OK")
</pallas_src>

<mosaic_0001>
module attributes {stable_mosaic.version = 11 : i64} {
  func.func @_cosine_pass_kernel(%arg0: i32, %arg1: i32, %arg2: memref<1x4x2x128xf32, #tpu.memory_space<vmem>>, %arg3: memref<1x4x2x128xf32, #tpu.memory_space<vmem>>, %arg4: memref<1x2x128xf32, #tpu.memory_space<vmem>>, %arg5: memref<1x1x8x128xf32, #tpu.memory_space<vmem>>) attributes {dimension_semantics = [#tpu.dimension_semantics<parallel>, #tpu.dimension_semantics<parallel>], iteration_bounds = array<i64: 2, 1>, scalar_prefetch = 0 : i64, scratch_operands = 0 : i64, tpu.core_type = #tpu.core_type<tc>, window_params = [{transform_indices = @transform_0, window_bounds = array<i64: 1, 4, 2, 128>}, {transform_indices = @transform_1, window_bounds = array<i64: 1, 4, 2, 128>}, {transform_indices = @transform_2, window_bounds = array<i64: 1, 2, 128>}, {transform_indices = @transform_3, window_bounds = array<i64: 1, 1, 8, 128>}]} {
    %c0 = arith.constant 0 : index
    %c0_0 = arith.constant 0 : index
    %c0_1 = arith.constant 0 : index
    %c0_2 = arith.constant 0 : index
    %0 = vector.load %arg2[%c0, %c0_0, %c0_1, %c0_2] : memref<1x4x2x128xf32, #tpu.memory_space<vmem>>, vector<1x4x2x128xf32>
    %c0_3 = arith.constant 0 : index
    %c0_4 = arith.constant 0 : index
    %c0_5 = arith.constant 0 : index
    %c0_6 = arith.constant 0 : index
    %1 = vector.load %arg3[%c0_3, %c0_4, %c0_5, %c0_6] : memref<1x4x2x128xf32, #tpu.memory_space<vmem>>, vector<1x4x2x128xf32>
    %2 = arith.mulf %0, %1 : vector<1x4x2x128xf32>
    %cst = arith.constant dense<0.000000e+00> : vector<1x2x128xf32>
    %3 = vector.multi_reduction <add>, %2, %cst [1] : vector<1x4x2x128xf32> to vector<1x2x128xf32>
    %4 = arith.mulf %0, %0 : vector<1x4x2x128xf32>
    %cst_7 = arith.constant dense<0.000000e+00> : vector<1x2x128xf32>
    %5 = vector.multi_reduction <add>, %4, %cst_7 [1] : vector<1x4x2x128xf32> to vector<1x2x128xf32>
    %6 = arith.mulf %1, %1 : vector<1x4x2x128xf32>
    %cst_8 = arith.constant dense<0.000000e+00> : vector<1x2x128xf32>
    %7 = vector.multi_reduction <add>, %6, %cst_8 [1] : vector<1x4x2x128xf32> to vector<1x2x128xf32>
    %8 = arith.mulf %5, %7 : vector<1x2x128xf32>
    %cst_9 = arith.constant 1.000000e-16 : f32
    %9 = vector.broadcast %cst_9 : f32 to vector<1x2x128xf32>
    %10 = arith.maximumf %8, %9 : vector<1x2x128xf32>
    %11 = math.rsqrt %10 : vector<1x2x128xf32>
    %12 = arith.mulf %3, %11 : vector<1x2x128xf32>
    %c0_10 = arith.constant 0 : index
    %c0_11 = arith.constant 0 : index
    %c0_12 = arith.constant 0 : index
    %13 = vector.load %arg4[%c0_10, %c0_11, %c0_12] : memref<1x2x128xf32, #tpu.memory_space<vmem>>, vector<1x2x128xf32>
    tpu.vector_store %arg4[%c0_10, %c0_11, %c0_12], %12 {strides = array<i32>} : memref<1x2x128xf32, #tpu.memory_space<vmem>>, vector<1x2x128xf32>,
    %14 = vector.shape_cast %12 : vector<1x2x128xf32> to vector<1x1x2x128xf32>
    %cst_13 = arith.constant dense<0xFF800000> : vector<1xf32>
    %15 = vector.multi_reduction <maximumf>, %14, %cst_13 [1, 2, 3] : vector<1x1x2x128xf32> to vector<1xf32>
    %16 = vector.shape_cast %15 : vector<1xf32> to vector<1x1x1x1xf32>
    %17 = vector.extract %16[0, 0, 0, 0] : f32 from vector<1x1x1x1xf32>
    %18 = vector.broadcast %17 : f32 to vector<1x1x8x128xf32>
    %c0_14 = arith.constant 0 : index
    %c0_15 = arith.constant 0 : index
    %c0_16 = arith.constant 0 : index
    %c0_17 = arith.constant 0 : index
    %19 = vector.load %arg5[%c0_14, %c0_15, %c0_16, %c0_17] : memref<1x1x8x128xf32, #tpu.memory_space<vmem>>, vector<1x1x8x128xf32>
    tpu.vector_store %arg5[%c0_14, %c0_15, %c0_16, %c0_17], %18 {strides = array<i32>} : memref<1x1x8x128xf32, #tpu.memory_space<vmem>>, vector<1x1x8x128xf32>,
    return
  }
  func.func @transform_0(%arg0: i32, %arg1: i32) -> (i32, i32, i32, i32) {
    %c0_i32 = arith.constant 0 : i32
    %c0_i32_0 = arith.constant 0 : i32
    %c0_i32_1 = arith.constant 0 : i32
    return %arg0, %c0_i32, %arg1, %c0_i32_0 : i32, i32, i32, i32
  }
  func.func @transform_1(%arg0: i32, %arg1: i32) -> (i32, i32, i32, i32) {
    %c0_i32 = arith.constant 0 : i32
    %c0_i32_0 = arith.constant 0 : i32
    %c0_i32_1 = arith.constant 0 : i32
    return %arg0, %c0_i32, %arg1, %c0_i32_0 : i32, i32, i32, i32
  }
  func.func @transform_2(%arg0: i32, %arg1: i32) -> (i32, i32, i32) {
    %c0_i32 = arith.constant 0 : i32
    %c0_i32_0 = arith.constant 0 : i32
    return %arg0, %arg1, %c0_i32 : i32, i32, i32
  }
  func.func @transform_3(%arg0: i32, %arg1: i32) -> (i32, i32, i32, i32) {
    %c0_i32 = arith.constant 0 : i32
    %c0_i32_0 = arith.constant 0 : i32
    %c0_i32_1 = arith.constant 0 : i32
    return %arg0, %arg1, %c0_i32, %c0_i32_0 : i32, i32, i32, i32
  }
}

module attributes {stable_mosaic.version = 11 : i64} {
  func.func @_blend_kernel(%arg0: i32, %arg1: i32, %arg2: memref<2xf32, #tpu.memory_space<smem>>, %arg3: memref<1x4x2x128xf32, #tpu.memory_space<vmem>>, %arg4: memref<1x4x2x128xf32, #tpu.memory_space<vmem>>, %arg5: memref<1x2x128xf32, #tpu.memory_space<vmem>>, %arg6: memref<1x4x2x128xf32, #tpu.memory_space<vmem>>) attributes {dimension_semantics = [#tpu.dimension_semantics<parallel>, #tpu.dimension_semantics<parallel>], iteration_bounds = array<i64: 2, 1>, scalar_prefetch = 1 : i64, scratch_operands = 0 : i64, tpu.core_type = #tpu.core_type<tc>, window_params = [{transform_indices = @transform_0, window_bounds = array<i64: 1, 4, 2, 128>}, {transform_indices = @transform_1, window_bounds = array<i64: 1, 4, 2, 128>}, {transform_indices = @transform_2, window_bounds = array<i64: 1, 2, 128>}, {transform_indices = @transform_3, window_bounds = array<i64: 1, 4, 2, 128>}]} {
    %0 = arith.index_cast %arg0 : i32 to index
    %1 = memref.load %arg2[%0] : memref<2xf32, #tpu.memory_space<smem>>
    %c0 = arith.constant 0 : index
    %c0_0 = arith.constant 0 : index
    %c0_1 = arith.constant 0 : index
    %c0_2 = arith.constant 0 : index
    %2 = vector.load %arg3[%c0, %c0_0, %c0_1, %c0_2] : memref<1x4x2x128xf32, #tpu.memory_space<vmem>>, vector<1x4x2x128xf32>
    %c0_3 = arith.constant 0 : index
    %c0_4 = arith.constant 0 : index
    %c0_5 = arith.constant 0 : index
    %c0_6 = arith.constant 0 : index
    %3 = vector.load %arg4[%c0_3, %c0_4, %c0_5, %c0_6] : memref<1x4x2x128xf32, #tpu.memory_space<vmem>>, vector<1x4x2x128xf32>
    %c0_7 = arith.constant 0 : index
    %c0_8 = arith.constant 0 : index
    %c0_9 = arith.constant 0 : index
    %4 = vector.load %arg5[%c0_7, %c0_8, %c0_9] : memref<1x2x128xf32, #tpu.memory_space<vmem>>, vector<1x2x128xf32>
    %5 = vector.broadcast %1 : f32 to vector<1x2x128xf32>
    %6 = arith.subf %4, %5 : vector<1x2x128xf32>
    %7 = math.exp %6 : vector<1x2x128xf32>
    %8 = vector.shape_cast %7 : vector<1x2x128xf32> to vector<1x1x2x128xf32>
    %9 = arith.subf %3, %2 : vector<1x4x2x128xf32>
    %10 = vector.broadcast %8 : vector<1x1x2x128xf32> to vector<1x4x2x128xf32>
    %11 = arith.mulf %10, %9 : vector<1x4x2x128xf32>
    %12 = arith.addf %2, %11 : vector<1x4x2x128xf32>
    %c0_10 = arith.constant 0 : index
    %c0_11 = arith.constant 0 : index
    %c0_12 = arith.constant 0 : index
    %c0_13 = arith.constant 0 : index
    %13 = vector.load %arg6[%c0_10, %c0_11, %c0_12, %c0_13] : memref<1x4x2x128xf32, #tpu.memory_space<vmem>>, vector<1x4x2x128xf32>
    tpu.vector_store %arg6[%c0_10, %c0_11, %c0_12, %c0_13], %12 {strides = array<i32>} : memref<1x4x2x128xf32, #tpu.memory_space<vmem>>, vector<1x4x2x128xf32>,
    return
  }
  func.func @transform_0(%arg0: i32, %arg1: i32, %arg2: memref<2xf32, #tpu.memory_space<smem>>) -> (i32, i32, i32, i32) {
    %c0_i32 = arith.constant 0 : i32
    %c0_i32_0 = arith.constant 0 : i32
    %c0_i32_1 = arith.constant 0 : i32
    return %arg0, %c0_i32, %arg1, %c0_i32_0 : i32, i32, i32, i32
  }
  func.func @transform_1(%arg0: i32, %arg1: i32, %arg2: memref<2xf32, #tpu.memory_space<smem>>) -> (i32, i32, i32, i32) {
    %c0_i32 = arith.constant 0 : i32
    %c0_i32_0 = arith.constant 0 : i32
    %c0_i32_1 = arith.constant 0 : i32
    return %arg0, %c0_i32, %arg1, %c0_i32_0 : i32, i32, i32, i32
  }
  func.func @transform_2(%arg0: i32, %arg1: i32, %arg2: memref<2xf32, #tpu.memory_space<smem>>) -> (i32, i32, i32) {
    %c0_i32 = arith.constant 0 : i32
    %c0_i32_0 = arith.constant 0 : i32
    return %arg0, %arg1, %c0_i32 : i32, i32, i32
  }
  func.func @transform_3(%arg0: i32, %arg1: i32, %arg2: memref<2xf32, #tpu.memory_space<smem>>) -> (i32, i32, i32, i32) {
    %c0_i32 = arith.constant 0 : i32
    %c0_i32_0 = arith.constant 0 : i32
    %c0_i32_1 = arith.constant 0 : i32
    return %arg0, %c0_i32, %arg1, %c0_i32_0 : i32, i32, i32, i32
  }
}

</mosaic_0001>

<llo_original>
// kernel: template_matching.2
$region0: #{template_matching.2}
  #allocation0 [shape = 'u32[]', space=smem, size = 0x4, offset = 0x4, fixed_abs, tag = 'smem constant byte address 0x4 - core index']
  #allocation1 [shape = 'u32[144,128]{1,0:T(1,128)}', space=vmem, size = 0x12000, scoped, tag = 'internal scratch']
  %s0 = inlined_call_operand.vmem [shape: f32[2,4,2,128], index: 0, kind: input, shape index: {}]
  %s1 = inlined_call_operand.vmem [shape: f32[2,4,2,128], index: 1, kind: input, shape index: {}]
  %s2 = inlined_call_operand.vmem [shape: f32[2,2,128], index: 2, kind: output, shape index: {0}]
  %s3 = inlined_call_operand.vmem [shape: f32[2,1,8,128], index: 3, kind: output, shape index: {1}]
  %4 = xla_tuple %s2, %s3
  %s5 = sld [smem:[#allocation0]]
  $region49: #{template_matching.2} parent=0
    _
  %s7 = ssub.s32 1, %s5
  %s8 = scalar_select 0, %s7, %s5
  loop: start=0, step=1, limit=4
  $region2: #{template_matching.2} parent=0 // loop_pre_header
    _
  $region3: #{template_matching.2} parent=0 // loop_header
    %s10 = sphi 0, %s14
    %p11 = scmp.ge.s32.totalorder %s10, 4
    %s17 = sphi 0, %s29
    %s18 = sphi 0, %s25
    %s19 = sphi 0, %s17
    %s20 = sphi 0, %s18
    %s21 = sphi 0, %s19
    %s22 = sphi 0, %s20
    %s34 = sphi 0, %s36
    %s37 = sphi 0, %s34
    %s38 = sphi 0, %s37
    %s54 = sphi 0, %s38
    %s62 = sphi 0, %s64
    %s65 = sphi 0, %s62
    %s66 = sphi 0, %s65
    %s82 = sphi 0, %s66
    %s90 = sphi 0, %s92
    %s93 = sphi 0, %s90
    %s94 = sphi 0, %s93
    %s110 = sphi 0, %s94
    %s118 = sphi 0, %s120
    %s121 = sphi 0, %s118
    %s122 = sphi 0, %s121
    %s138 = sphi 0, %s122
  $region4: #{template_matching.2} parent=0 // loop_header_branch
    %13 = sbr.rel (%p11) target = $region8
  $region5: #{template_matching.2} parent=0 // loop_body
    %s15 = ssub.s32 %s10, 1
    %s16 = ssub.s32 %s10, 2
    %s23 = sadd.s32 1, %s18
    %p24 = scmp.ge.s32.totalorder %s23, 1
    %s25 = scalar_select %p24, 0, %s23
    %s26 = sadd.s32 1, %s17
    %s27 = scalar_select %p24, %s26, %s17
    %p28 = scmp.ge.s32.totalorder %s27, 2
    %s29 = scalar_select %p28, 0, %s27
    %s30 = ssub.s32 %s17, %s29
    %s31 = ssub.s32 %s18, %s25
    %s32 = sor.u32 %s30, %s31
    %p33 = scmp.eq.s32.totalorder %s32, 0
    %s35 = sadd.s32 %s34, 1
    %s36 = scalar_select %p33, %s34, %s35
    %p39 = pneg %p33
    %p40 = scmp.eq.s32.totalorder %s10, 1
    %p41 = por %p39, %p40
    %p42 = scmp.ne.s32.totalorder %s34, %s37
    %p43 = scmp.eq.s32.totalorder %s10, 0
    %p44 = por %p42, %p43
    %p45 = scmp.ne.s32.totalorder %s34, %s37
    %p46 = scmp.eq.s32.totalorder %s15, 1
    %p47 = por %p45, %p46
    %p48 = scmp.ne.s32.totalorder %s37, %s38
    %p49 = scmp.eq.s32.totalorder %s15, 0
    %p50 = por %p48, %p49
    %p51 = scmp.ne.s32.totalorder %s37, %s38
    %p52 = scmp.eq.s32.totalorder %s16, 1
    %p53 = por %p51, %p52
    %p55 = scmp.ne.s32.totalorder %s38, %s54
    %p56 = scmp.eq.s32.totalorder %s16, 0
    %p57 = por %p55, %p56
    %s58 = ssub.s32 %s17, %s29
    %s59 = ssub.s32 %s18, %s25
    %s60 = sor.u32 %s58, %s59
    %p61 = scmp.eq.s32.totalorder %s60, 0
    %s63 = sadd.s32 %s62, 1
    %s64 = scalar_select %p61, %s62, %s63
    %p67 = pneg %p61
    %p68 = scmp.eq.s32.totalorder %s10, 1
    %p69 = por %p67, %p68
    %p70 = scmp.ne.s32.totalorder %s62, %s65
    %p71 = scmp.eq.s32.totalorder %s10, 0
    %p72 = por %p70, %p71
    %p73 = scmp.ne.s32.totalorder %s62, %s65
    %p74 = scmp.eq.s32.totalorder %s15, 1
    %p75 = por %p73, %p74
    %p76 = scmp.ne.s32.totalorder %s65, %s66
    %p77 = scmp.eq.s32.totalorder %s15, 0
    %p78 = por %p76, %p77
    %p79 = scmp.ne.s32.totalorder %s65, %s66
    %p80 = scmp.eq.s32.totalorder %s16, 1
    %p81 = por %p79, %p80
    %p83 = scmp.ne.s32.totalorder %s66, %s82
    %p84 = scmp.eq.s32.totalorder %s16, 0
    %p85 = por %p83, %p84
    %s86 = ssub.s32 %s17, %s29
    %s87 = ssub.s32 %s18, %s25
    %s88 = sor.u32 %s86, %s87
    %p89 = scmp.eq.s32.totalorder %s88, 0
    %s91 = sadd.s32 %s90, 1
    %s92 = scalar_select %p89, %s90, %s91
    %p95 = pneg %p89
    %p96 = scmp.eq.s32.totalorder %s10, 1
    %p97 = por %p95, %p96
    %p98 = scmp.ne.s32.totalorder %s90, %s93
    %p99 = scmp.eq.s32.totalorder %s10, 0
    %p100 = por %p98, %p99
    %p101 = scmp.ne.s32.totalorder %s90, %s93
    %p102 = scmp.eq.s32.totalorder %s15, 1
    %p103 = por %p101, %p102
    %p104 = scmp.ne.s32.totalorder %s93, %s94
    %p105 = scmp.eq.s32.totalorder %s15, 0
    %p106 = por %p104, %p105
    %p107 = scmp.ne.s32.totalorder %s93, %s94
    %p108 = scmp.eq.s32.totalorder %s16, 1
    %p109 = por %p107, %p108
    %p111 = scmp.ne.s32.totalorder %s94, %s110
    %p112 = scmp.eq.s32.totalorder %s16, 0
    %p113 = por %p111, %p112
    %s114 = ssub.s32 %s17, %s29
    %s115 = ssub.s32 %s18, %s25
    %s116 = sor.u32 %s114, %s115
    %p117 = scmp.eq.s32.totalorder %s116, 0
    %s119 = sadd.s32 %s118, 1
    %s120 = scalar_select %p117, %s118, %s119
    %p123 = pneg %p117
    %p124 = scmp.eq.s32.totalorder %s10, 1
    %p125 = por %p123, %p124
    %p126 = scmp.ne.s32.totalorder %s118, %s121
    %p127 = scmp.eq.s32.totalorder %s10, 0
    %p128 = por %p126, %p127
    %p129 = scmp.ne.s32.totalorder %s118, %s121
    %p130 = scmp.eq.s32.totalorder %s15, 1
    %p131 = por %p129, %p130
    %p132 = scmp.ne.s32.totalorder %s121, %s122
    %p133 = scmp.eq.s32.totalorder %s15, 0
    %p134 = por %p132, %p133
    %p135 = scmp.ne.s32.totalorder %s121, %s122
    %p136 = scmp.eq.s32.totalorder %s16, 1
    %p137 = por %p135, %p136
    %p139 = scmp.ne.s32.totalorder %s122, %s138
    %p140 = scmp.eq.s32.totalorder %s16, 0
    %p141 = por %p139, %p140
    %p142 = scmp.le.s32.totalorder 1, %s10
    %p143 = scmp.lt.s32.totalorder %s10, 3
    %p144 = pnand %p142, %p143
    %p145 = pneg %p144
    // Predicated region
    $region9: #{template_matching.2} parent=5 // pred_check
      _
    $region10: #{template_matching.2} parent=5 // pred_check_branch
      %147 = sbr.rel (%p144) target = $region12
    $region11: #{template_matching.2} parent=5 // pred_region
      %s148 = ssub.s32 %s10, 1
    $region12: #{template_matching.2} parent=5 // pred_fallthru
      _
    %p149 = scmp.lt.s32.totalorder %s10, 2
    // Predicated region
    $region13: #{template_matching.2} parent=5 // pred_check
      %p150 = pneg %p149
    $region14: #{template_matching.2} parent=5 // pred_check_branch
      %152 = sbr.rel (%p150) target = $region16
    $region15: #{template_matching.2} parent=5 // pred_region
      // Predicated region
      $region17: #{template_matching.2} parent=15 // pred_check
        %p153 = pneg %p44
      $region18: #{template_matching.2} parent=15 // pred_check_branch
        %155 = sbr.rel (%p153) target = $region20
      $region19: #{template_matching.2} parent=15 // pred_region
        %p156 = scmp.lt.s32.totalorder %s17, 1
        %s157 = scalar_select %p156, %s17, 1
        %p158 = scmp.lt.s32.totalorder %s18, 0
        %s159 = scalar_select %p158, %s18, 0
        %s160 = smul.addr %s157, 4
        %s161 = sadd.s32 %s159, %s160
        %s162 = smul.addr %s161, 2
        %s163 = scalar_lea.vmem %s0, %s162
      $region20: #{template_matching.2} parent=15 // pred_fallthru
        _
      // Predicated region
      $region21: #{template_matching.2} parent=15 // pred_check
        %p164 = pneg %p72
      $region22: #{template_matching.2} parent=15 // pred_check_branch
        %166 = sbr.rel (%p164) target = $region24
      $region23: #{template_matching.2} parent=15 // pred_region
        %p167 = scmp.lt.s32.totalorder %s17, 1
        %s168 = scalar_select %p167, %s17, 1
        %p169 = scmp.lt.s32.totalorder %s18, 0
        %s170 = scalar_select %p169, %s18, 0
        %s171 = smul.addr %s168, 4
        %s172 = sadd.s32 %s170, %s171
        %s173 = smul.addr %s172, 2
        %s174 = scalar_lea.vmem %s1, %s173
      $region24: #{template_matching.2} parent=15 // pred_fallthru
        _
    $region16: #{template_matching.2} parent=5 // pred_fallthru
      _
    %p175 = scmp.le.s32.totalorder 1, %s10
    %p176 = scmp.lt.s32.totalorder %s10, 3
    %p177 = pnand %p175, %p176
    %p178 = pneg %p177
    // Predicated region
    $region25: #{template_matching.2} parent=5 // pred_check
      _
    $region26: #{template_matching.2} parent=5 // pred_check_branch
      %180 = sbr.rel (%p177) target = $region28
    $region27: #{template_matching.2} parent=5 // pred_region
      %s181 = ssub.s32 %s10, 1
      %p182 = scmp.lt.s32.totalorder %s19, 1
      %s183 = scalar_select %p182, %s19, 1
      %p184 = scmp.lt.s32.totalorder %s20, 0
      %s185 = scalar_select %p184, %s20, 0
      %s186 = smul.addr %s183, 4
      %s187 = sadd.s32 %s185, %s186
      %s188 = smul.addr %s187, 2
      %s189 = scalar_lea.vmem %s0, %s188
      %p190 = pneg %p50
      %p191 = pneg %p47
      %p192 = scmp.lt.s32.totalorder %s19, 1
      %s193 = scalar_select %p192, %s19, 1
      %p194 = scmp.lt.s32.totalorder %s20, 0
      %s195 = scalar_select %p194, %s20, 0
      %s196 = smul.addr %s193, 4
      %s197 = sadd.s32 %s195, %s196
      %s198 = smul.addr %s197, 2
      %s199 = scalar_lea.vmem %s1, %s198
      %p200 = pneg %p78
      %p201 = pneg %p75
      %p202 = pneg %p106
      %p203 = pneg %p103
      %p204 = scmp.lt.s32.totalorder %s19, 1
      %s205 = scalar_select %p204, %s19, 1
      %p206 = scmp.lt.s32.totalorder %s20, 0
      %s207 = scalar_select %p206, %s20, 0
      %s208 = sadd.s32 %s207, %s205
      %s209 = smul.addr %s208, 2
      %s210 = scalar_lea.vmem %s2, %s209
      %p211 = pneg %p134
      %p212 = pneg %p131
      %p213 = scmp.lt.s32.totalorder %s19, 1
      %s214 = scalar_select %p213, %s19, 1
      %p215 = scmp.lt.s32.totalorder %s20, 0
      %s216 = scalar_select %p215, %s20, 0
      %s217 = sadd.s32 %s216, %s214
      %s218 = smul.addr %s217, 8
      %s219 = scalar_lea.vmem %s3, %s218
      %p220 = scmp.lt.s32.totalorder %s19, 1
      %s221 = scalar_select %p220, %s19, 1
      %p222 = scmp.lt.s32.totalorder %s20, 0
      %s223 = scalar_select %p222, %s20, 0
      %s224 = smul.addr %s221, 4
      %s225 = sadd.s32 %s223, %s224
      %s226 = smul.addr %s225, 2
      %s227 = scalar_lea.vmem %s0, %s226
      %p228 = scmp.lt.s32.totalorder %s19, 1
      %s229 = scalar_select %p228, %s19, 1
      %p230 = scmp.lt.s32.totalorder %s20, 0
      %s231 = scalar_select %p230, %s20, 0
      %s232 = smul.addr %s229, 4
      %s233 = sadd.s32 %s231, %s232
      %s234 = smul.addr %s233, 2
      %s235 = scalar_lea.vmem %s1, %s234
      %p236 = scmp.lt.s32.totalorder %s19, 1
      %s237 = scalar_select %p236, %s19, 1
      %p238 = scmp.lt.s32.totalorder %s20, 0
      %s239 = scalar_select %p238, %s20, 0
      %s240 = sadd.s32 %s239, %s237
      %s241 = smul.addr %s240, 2
      %s242 = scalar_lea.vmem %s2, %s241
      %p243 = scmp.lt.s32.totalorder %s19, 1
      %s244 = scalar_select %p243, %s19, 1
      %p245 = scmp.lt.s32.totalorder %s20, 0
      %s246 = scalar_select %p245, %s20, 0
      %s247 = sadd.s32 %s246, %s244
      %s248 = smul.addr %s247, 8
      %s249 = scalar_lea.vmem %s3, %s248
      %v250 = vld [vmem:[%s227] sm:$0x3]
      %v251 = vld [vmem:[%s227 + $0x2] sm:$0x3]
      %v252 = vld [vmem:[%s227 + $0x4] sm:$0x3]
      %v253 = vld [vmem:[%s227 + $0x6] sm:$0x3]
      %v254 = vld [vmem:[%s235] sm:$0x3]
      %v255 = vld [vmem:[%s235 + $0x2] sm:$0x3]
      %v256 = vld [vmem:[%s235 + $0x4] sm:$0x3]
      %v257 = vld [vmem:[%s235 + $0x6] sm:$0x3]
      %v258 = vmul.f32 %v250, %v254
      %v259 = vmul.f32 %v251, %v255
      %v260 = vmul.f32 %v252, %v256
      %v261 = vmul.f32 %v253, %v257
      %vm262 = vcmask 1041408
      %v263 = vsel %vm262, %v258, 0.0
      %v264 = vsel %vm262, %v259, 0.0
      %v265 = vadd.f32 %v263, %v264
      %v266 = vsel %vm262, %v260, 0.0
      %v267 = vadd.f32 %v265, %v266
      %v268 = vsel %vm262, %v261, 0.0
      %v269 = vadd.f32 %v267, %v268
      %v270 = vmul.f32 %v250, %v250
      %v271 = vmul.f32 %v251, %v251
      %v272 = vmul.f32 %v252, %v252
      %v273 = vmul.f32 %v253, %v253
      %v274 = vsel %vm262, %v270, 0.0
      %v275 = vsel %vm262, %v271, 0.0
      %v276 = vadd.f32 %v274, %v275
      %v277 = vsel %vm262, %v272, 0.0
      %v278 = vadd.f32 %v276, %v277
      %v279 = vsel %vm262, %v273, 0.0
      %v280 = vadd.f32 %v278, %v279
      %v281 = vmul.f32 %v254, %v254
      %v282 = vmul.f32 %v255, %v255
      %v283 = vmul.f32 %v256, %v256
      %v284 = vmul.f32 %v257, %v257
      %v285 = vsel %vm262, %v281, 0.0
      %v286 = vsel %vm262, %v282, 0.0
      %v287 = vadd.f32 %v285, %v286
      %v288 = vsel %vm262, %v283, 0.0
      %v289 = vadd.f32 %v287, %v288
      %v290 = vsel %vm262, %v284, 0.0
      %v291 = vadd.f32 %v289, %v290
      %v292 = vmul.f32 %v280, %v291
      %v293 = vmax.f32 %v292, 1e-16
      %v294 = vrsqrt.pop %v293
      %v295 = vmul.f32 %v269, %v294
      %296 = vst [vmem:[%s242] sm:$0x3] %v295
      %v297 = vsel %vm262, %v295, -inf
      %298 = vmax.xlane.f32.xlu0 %v297
      %v299 = vpop.xlane.xlu0 %298
      %v300 = vrot.slane %v299, 4
      %v301 = vmax.f32 %v299, %v300
      %v302 = vrot.slane %v301, 2
      %v303 = vmax.f32 %v301, %v302
      %v304 = vrot.slane %v303, 1
      %v305 = vmax.f32 %v303, %v304
      %s306 = vtos %v305
      %v307 = vstv %s306
      %308 = vst [vmem:[%s249] sm:$0xff] %v307
      %p309 = scmp.lt.s32.totalorder %s19, 1
      %s310 = scalar_select %p309, %s19, 1
      %p311 = scmp.lt.s32.totalorder %s20, 0
      %s312 = scalar_select %p311, %s20, 0
      %s313 = sadd.s32 %s312, %s310
      %s314 = smul.addr %s313, 2
      %s315 = scalar_lea.vmem %s2, %s314
      %p316 = scmp.lt.s32.totalorder %s19, 1
      %s317 = scalar_select %p316, %s19, 1
      %p318 = scmp.lt.s32.totalorder %s20, 0
      %s319 = scalar_select %p318, %s20, 0
      %s320 = sadd.s32 %s319, %s317
      %s321 = smul.addr %s320, 8
      %s322 = scalar_lea.vmem %s3, %s321
      // Predicated region
      $region29: #{template_matching.2} parent=27 // pred_check
        %p323 = pneg %p103
      $region30: #{template_matching.2} parent=27 // pred_check_branch
        %325 = sbr.rel (%p323) target = $region32
      $region31: #{template_matching.2} parent=27 // pred_region
        _
      $region32: #{template_matching.2} parent=27 // pred_fallthru
        _
      // Predicated region
      $region33: #{template_matching.2} parent=27 // pred_check
        %p326 = pneg %p131
      $region34: #{template_matching.2} parent=27 // pred_check_branch
        %328 = sbr.rel (%p326) target = $region36
      $region35: #{template_matching.2} parent=27 // pred_region
        _
      $region36: #{template_matching.2} parent=27 // pred_fallthru
        _
    $region28: #{template_matching.2} parent=5 // pred_fallthru
      _
    %p329 = scmp.le.s32.totalorder 2, %s10
    // Predicated region
    $region37: #{template_matching.2} parent=5 // pred_check
      %p330 = pneg %p329
    $region38: #{template_matching.2} parent=5 // pred_check_branch
      %332 = sbr.rel (%p330) target = $region40
    $region39: #{template_matching.2} parent=5 // pred_region
      %s333 = ssub.s32 %s10, 2
      // Predicated region
      $region41: #{template_matching.2} parent=39 // pred_check
        %p334 = pneg %p109
      $region42: #{template_matching.2} parent=39 // pred_check_branch
        %336 = sbr.rel (%p334) target = $region44
      $region43: #{template_matching.2} parent=39 // pred_region
        %p337 = scmp.lt.s32.totalorder %s21, 1
        %s338 = scalar_select %p337, %s21, 1
        %p339 = scmp.lt.s32.totalorder %s22, 0
        %s340 = scalar_select %p339, %s22, 0
        %s341 = sadd.s32 %s340, %s338
        %s342 = smul.addr %s341, 2
        %s343 = scalar_lea.vmem %s2, %s342
      $region44: #{template_matching.2} parent=39 // pred_fallthru
        _
      // Predicated region
      $region45: #{template_matching.2} parent=39 // pred_check
        %p344 = pneg %p137
      $region46: #{template_matching.2} parent=39 // pred_check_branch
        %346 = sbr.rel (%p344) target = $region48
      $region47: #{template_matching.2} parent=39 // pred_region
        %p347 = scmp.lt.s32.totalorder %s21, 1
        %s348 = scalar_select %p347, %s21, 1
        %p349 = scmp.lt.s32.totalorder %s22, 0
        %s350 = scalar_select %p349, %s22, 0
        %s351 = sadd.s32 %s350, %s348
        %s352 = smul.addr %s351, 8
        %s353 = scalar_lea.vmem %s3, %s352
      $region48: #{template_matching.2} parent=39 // pred_fallthru
        _
    $region40: #{template_matching.2} parent=5 // pred_fallthru
      _
  $region6: #{template_matching.2} parent=0 // loop_footer
    %s14 = sadd.s32 1, %s10
  $region7: #{template_matching.2} parent=0 // loop_footer_branch
    %9 = sbr.rel target = $region3
  $region8: #{template_matching.2} parent=0 // loop_exit
    _

// kernel: template_matching.3
$region0: #{template_matching.3}
  #allocation0 [shape = 'u32[]', space=smem, size = 0x4, offset = 0x4, fixed_abs, tag = 'smem constant byte address 0x4 - core index']
  #allocation1 [shape = 'u32[144,128]{1,0:T(1,128)}', space=vmem, size = 0x12000, scoped, tag = 'internal scratch']
  #allocation2 [shape = 's32[1]{0}', space=sflag, size = 0x4, scoped, tag = 'scoped memory for template_matching.3']
  #allocation3 [shape = 'u8[512]{0}', space=smem, size = 0x200, scoped, tag = 'prefetched SMEM operand 0']
  %s0 = inlined_call_operand.vmem [shape: f32[2], index: 0, kind: input, shape index: {}]
  %s1 = inlined_call_operand.vmem [shape: f32[2,4,2,128], index: 1, kind: input, shape index: {}]
  %s2 = inlined_call_operand.vmem [shape: f32[2,4,2,128], index: 2, kind: input, shape index: {}]
  %s3 = inlined_call_operand.vmem [shape: f32[2,2,128], index: 3, kind: input, shape index: {}]
  %s4 = inlined_call_operand.vmem [shape: f32[2,4,2,128], index: 4, kind: output, shape index: {}]
  %s5 = sld [smem:[#allocation0]]
  $region45: #{template_matching.3} parent=0
    _
  %s7 = ssub.s32 1, %s5
  %s8 = scalar_select 0, %s7, %s5
  %s9 = sshll.u32 %s0, 4
  %s10 = int_to_ptr.vmem [resolvable:$true] %s9
  %12 = dma.vmem_to_smem %s10, 16, [#allocation3], [#allocation2]
  %13 = dma.done [#allocation2], 16
  %14 = sfence
  loop: start=0, step=1, limit=4
  $region2: #{template_matching.3} parent=0 // loop_pre_header
    _
  $region3: #{template_matching.3} parent=0 // loop_header
    %s16 = sphi 0, %s20
    %p17 = scmp.ge.s32.totalorder %s16, 4
    %s23 = sphi 0, %s35
    %s24 = sphi 0, %s31
    %s25 = sphi 0, %s23
    %s26 = sphi 0, %s24
    %s27 = sphi 0, %s25
    %s28 = sphi 0, %s26
    %s40 = sphi 0, %s42
    %s43 = sphi 0, %s40
    %s44 = sphi 0, %s43
    %s60 = sphi 0, %s44
    %s68 = sphi 0, %s70
    %s71 = sphi 0, %s68
    %s72 = sphi 0, %s71
    %s88 = sphi 0, %s72
    %s96 = sphi 0, %s98
    %s99 = sphi 0, %s96
    %s100 = sphi 0, %s99
    %s116 = sphi 0, %s100
    %s124 = sphi 0, %s126
    %s127 = sphi 0, %s124
    %s128 = sphi 0, %s127
    %s144 = sphi 0, %s128
  $region4: #{template_matching.3} parent=0 // loop_header_branch
    %19 = sbr.rel (%p17) target = $region8
  $region5: #{template_matching.3} parent=0 // loop_body
    %s21 = ssub.s32 %s16, 1
    %s22 = ssub.s32 %s16, 2
    %s29 = sadd.s32 1, %s24
    %p30 = scmp.ge.s32.totalorder %s29, 1
    %s31 = scalar_select %p30, 0, %s29
    %s32 = sadd.s32 1, %s23
    %s33 = scalar_select %p30, %s32, %s23
    %p34 = scmp.ge.s32.totalorder %s33, 2
    %s35 = scalar_select %p34, 0, %s33
    %s36 = ssub.s32 %s23, %s35
    %s37 = ssub.s32 %s24, %s31
    %s38 = sor.u32 %s36, %s37
    %p39 = scmp.eq.s32.totalorder %s38, 0
    %s41 = sadd.s32 %s40, 1
    %s42 = scalar_select %p39, %s40, %s41
    %p45 = pneg %p39
    %p46 = scmp.eq.s32.totalorder %s16, 1
    %p47 = por %p45, %p46
    %p48 = scmp.ne.s32.totalorder %s40, %s43
    %p49 = scmp.eq.s32.totalorder %s16, 0
    %p50 = por %p48, %p49
    %p51 = scmp.ne.s32.totalorder %s40, %s43
    %p52 = scmp.eq.s32.totalorder %s21, 1
    %p53 = por %p51, %p52
    %p54 = scmp.ne.s32.totalorder %s43, %s44
    %p55 = scmp.eq.s32.totalorder %s21, 0
    %p56 = por %p54, %p55
    %p57 = scmp.ne.s32.totalorder %s43, %s44
    %p58 = scmp.eq.s32.totalorder %s22, 1
    %p59 = por %p57, %p58
    %p61 = scmp.ne.s32.totalorder %s44, %s60
    %p62 = scmp.eq.s32.totalorder %s22, 0
    %p63 = por %p61, %p62
    %s64 = ssub.s32 %s23, %s35
    %s65 = ssub.s32 %s24, %s31
    %s66 = sor.u32 %s64, %s65
    %p67 = scmp.eq.s32.totalorder %s66, 0
    %s69 = sadd.s32 %s68, 1
    %s70 = scalar_select %p67, %s68, %s69
    %p73 = pneg %p67
    %p74 = scmp.eq.s32.totalorder %s16, 1
    %p75 = por %p73, %p74
    %p76 = scmp.ne.s32.totalorder %s68, %s71
    %p77 = scmp.eq.s32.totalorder %s16, 0
    %p78 = por %p76, %p77
    %p79 = scmp.ne.s32.totalorder %s68, %s71
    %p80 = scmp.eq.s32.totalorder %s21, 1
    %p81 = por %p79, %p80
    %p82 = scmp.ne.s32.totalorder %s71, %s72
    %p83 = scmp.eq.s32.totalorder %s21, 0
    %p84 = por %p82, %p83
    %p85 = scmp.ne.s32.totalorder %s71, %s72
    %p86 = scmp.eq.s32.totalorder %s22, 1
    %p87 = por %p85, %p86
    %p89 = scmp.ne.s32.totalorder %s72, %s88
    %p90 = scmp.eq.s32.totalorder %s22, 0
    %p91 = por %p89, %p90
    %s92 = ssub.s32 %s23, %s35
    %s93 = ssub.s32 %s24, %s31
    %s94 = sor.u32 %s92, %s93
    %p95 = scmp.eq.s32.totalorder %s94, 0
    %s97 = sadd.s32 %s96, 1
    %s98 = scalar_select %p95, %s96, %s97
    %p101 = pneg %p95
    %p102 = scmp.eq.s32.totalorder %s16, 1
    %p103 = por %p101, %p102
    %p104 = scmp.ne.s32.totalorder %s96, %s99
    %p105 = scmp.eq.s32.totalorder %s16, 0
    %p106 = por %p104, %p105
    %p107 = scmp.ne.s32.totalorder %s96, %s99
    %p108 = scmp.eq.s32.totalorder %s21, 1
    %p109 = por %p107, %p108
    %p110 = scmp.ne.s32.totalorder %s99, %s100
    %p111 = scmp.eq.s32.totalorder %s21, 0
    %p112 = por %p110, %p111
    %p113 = scmp.ne.s32.totalorder %s99, %s100
    %p114 = scmp.eq.s32.totalorder %s22, 1
    %p115 = por %p113, %p114
    %p117 = scmp.ne.s32.totalorder %s100, %s116
    %p118 = scmp.eq.s32.totalorder %s22, 0
    %p119 = por %p117, %p118
    %s120 = ssub.s32 %s23, %s35
    %s121 = ssub.s32 %s24, %s31
    %s122 = sor.u32 %s120, %s121
    %p123 = scmp.eq.s32.totalorder %s122, 0
    %s125 = sadd.s32 %s124, 1
    %s126 = scalar_select %p123, %s124, %s125
    %p129 = pneg %p123
    %p130 = scmp.eq.s32.totalorder %s16, 1
    %p131 = por %p129, %p130
    %p132 = scmp.ne.s32.totalorder %s124, %s127
    %p133 = scmp.eq.s32.totalorder %s16, 0
    %p134 = por %p132, %p133
    %p135 = scmp.ne.s32.totalorder %s124, %s127
    %p136 = scmp.eq.s32.totalorder %s21, 1
    %p137 = por %p135, %p136
    %p138 = scmp.ne.s32.totalorder %s127, %s128
    %p139 = scmp.eq.s32.totalorder %s21, 0
    %p140 = por %p138, %p139
    %p141 = scmp.ne.s32.totalorder %s127, %s128
    %p142 = scmp.eq.s32.totalorder %s22, 1
    %p143 = por %p141, %p142
    %p145 = scmp.ne.s32.totalorder %s128, %s144
    %p146 = scmp.eq.s32.totalorder %s22, 0
    %p147 = por %p145, %p146
    %p148 = scmp.le.s32.totalorder 1, %s16
    %p149 = scmp.lt.s32.totalorder %s16, 3
    %p150 = pnand %p148, %p149
    %p151 = pneg %p150
    // Predicated region
    $region9: #{template_matching.3} parent=5 // pred_check
      _
    $region10: #{template_matching.3} parent=5 // pred_check_branch
      %153 = sbr.rel (%p150) target = $region12
    $region11: #{template_matching.3} parent=5 // pred_region
      %s154 = ssub.s32 %s16, 1
    $region12: #{template_matching.3} parent=5 // pred_fallthru
      _
    %p155 = scmp.lt.s32.totalorder %s16, 2
    // Predicated region
    $region13: #{template_matching.3} parent=5 // pred_check
      %p156 = pneg %p155
    $region14: #{template_matching.3} parent=5 // pred_check_branch
      %158 = sbr.rel (%p156) target = $region16
    $region15: #{template_matching.3} parent=5 // pred_region
      // Predicated region
      $region17: #{template_matching.3} parent=15 // pred_check
        %p159 = pneg %p50
      $region18: #{template_matching.3} parent=15 // pred_check_branch
        %161 = sbr.rel (%p159) target = $region20
      $region19: #{template_matching.3} parent=15 // pred_region
        %p162 = scmp.lt.s32.totalorder %s23, 1
        %s163 = scalar_select %p162, %s23, 1
        %p164 = scmp.lt.s32.totalorder %s24, 0
        %s165 = scalar_select %p164, %s24, 0
        %s166 = smul.addr %s163, 4
        %s167 = sadd.s32 %s165, %s166
        %s168 = smul.addr %s167, 2
        %s169 = scalar_lea.vmem %s1, %s168
      $region20: #{template_matching.3} parent=15 // pred_fallthru
        _
      // Predicated region
      $region21: #{template_matching.3} parent=15 // pred_check
        %p170 = pneg %p78
      $region22: #{template_matching.3} parent=15 // pred_check_branch
        %172 = sbr.rel (%p170) target = $region24
      $region23: #{template_matching.3} parent=15 // pred_region
        %p173 = scmp.lt.s32.totalorder %s23, 1
        %s174 = scalar_select %p173, %s23, 1
        %p175 = scmp.lt.s32.totalorder %s24, 0
        %s176 = scalar_select %p175, %s24, 0
        %s177 = smul.addr %s174, 4
        %s178 = sadd.s32 %s176, %s177
        %s179 = smul.addr %s178, 2
        %s180 = scalar_lea.vmem %s2, %s179
      $region24: #{template_matching.3} parent=15 // pred_fallthru
        _
      // Predicated region
      $region25: #{template_matching.3} parent=15 // pred_check
        %p181 = pneg %p106
      $region26: #{template_matching.3} parent=15 // pred_check_branch
        %183 = sbr.rel (%p181) target = $region28
      $region27: #{template_matching.3} parent=15 // pred_region
        %p184 = scmp.lt.s32.totalorder %s23, 1
        %s185 = scalar_select %p184, %s23, 1
        %p186 = scmp.lt.s32.totalorder %s24, 0
        %s187 = scalar_select %p186, %s24, 0
        %s188 = sadd.s32 %s187, %s185
        %s189 = smul.addr %s188, 2
        %s190 = scalar_lea.vmem %s3, %s189
      $region28: #{template_matching.3} parent=15 // pred_fallthru
        _
    $region16: #{template_matching.3} parent=5 // pred_fallthru
      _
    %p191 = scmp.le.s32.totalorder 1, %s16
    %p192 = scmp.lt.s32.totalorder %s16, 3
    %p193 = pnand %p191, %p192
    %p194 = pneg %p193
    // Predicated region
    $region29: #{template_matching.3} parent=5 // pred_check
      _
    $region30: #{template_matching.3} parent=5 // pred_check_branch
      %196 = sbr.rel (%p193) target = $region32
    $region31: #{template_matching.3} parent=5 // pred_region
      %s197 = ssub.s32 %s16, 1
      %p198 = scmp.lt.s32.totalorder %s25, 1
      %s199 = scalar_select %p198, %s25, 1
      %p200 = scmp.lt.s32.totalorder %s26, 0
      %s201 = scalar_select %p200, %s26, 0
      %s202 = smul.addr %s199, 4
      %s203 = sadd.s32 %s201, %s202
      %s204 = smul.addr %s203, 2
      %s205 = scalar_lea.vmem %s1, %s204
      %p206 = pneg %p56
      %p207 = pneg %p53
      %p208 = scmp.lt.s32.totalorder %s25, 1
      %s209 = scalar_select %p208, %s25, 1
      %p210 = scmp.lt.s32.totalorder %s26, 0
      %s211 = scalar_select %p210, %s26, 0
      %s212 = smul.addr %s209, 4
      %s213 = sadd.s32 %s211, %s212
      %s214 = smul.addr %s213, 2
      %s215 = scalar_lea.vmem %s2, %s214
      %p216 = pneg %p84
      %p217 = pneg %p81
      %p218 = scmp.lt.s32.totalorder %s25, 1
      %s219 = scalar_select %p218, %s25, 1
      %p220 = scmp.lt.s32.totalorder %s26, 0
      %s221 = scalar_select %p220, %s26, 0
      %s222 = sadd.s32 %s221, %s219
      %s223 = smul.addr %s222, 2
      %s224 = scalar_lea.vmem %s3, %s223
      %p225 = pneg %p112
      %p226 = pneg %p109
      %p227 = pneg %p140
      %p228 = pneg %p137
      %p229 = scmp.lt.s32.totalorder %s25, 1
      %s230 = scalar_select %p229, %s25, 1
      %p231 = scmp.lt.s32.totalorder %s26, 0
      %s232 = scalar_select %p231, %s26, 0
      %s233 = smul.addr %s230, 4
      %s234 = sadd.s32 %s232, %s233
      %s235 = smul.addr %s234, 2
      %s236 = scalar_lea.vmem %s4, %s235
      %p237 = scmp.lt.s32.totalorder %s25, 1
      %s238 = scalar_select %p237, %s25, 1
      %p239 = scmp.lt.s32.totalorder %s26, 0
      %s240 = scalar_select %p239, %s26, 0
      %s241 = smul.addr %s238, 4
      %s242 = sadd.s32 %s240, %s241
      %s243 = smul.addr %s242, 2
      %s244 = scalar_lea.vmem %s1, %s243
      %p245 = scmp.lt.s32.totalorder %s25, 1
      %s246 = scalar_select %p245, %s25, 1
      %p247 = scmp.lt.s32.totalorder %s26, 0
      %s248 = scalar_select %p247, %s26, 0
      %s249 = smul.addr %s246, 4
      %s250 = sadd.s32 %s248, %s249
      %s251 = smul.addr %s250, 2
      %s252 = scalar_lea.vmem %s2, %s251
      %p253 = scmp.lt.s32.totalorder %s25, 1
      %s254 = scalar_select %p253, %s25, 1
      %p255 = scmp.lt.s32.totalorder %s26, 0
      %s256 = scalar_select %p255, %s26, 0
      %s257 = sadd.s32 %s256, %s254
      %s258 = smul.addr %s257, 2
      %s259 = scalar_lea.vmem %s3, %s258
      %p260 = scmp.lt.s32.totalorder %s25, 1
      %s261 = scalar_select %p260, %s25, 1
      %p262 = scmp.lt.s32.totalorder %s26, 0
      %s263 = scalar_select %p262, %s26, 0
      %s264 = smul.addr %s261, 4
      %s265 = sadd.s32 %s263, %s264
      %s266 = smul.addr %s265, 2
      %s267 = scalar_lea.vmem %s4, %s266
      %s268 = sld [smem:[#allocation3 + %s25]]
      %v269 = vld [vmem:[%s244] sm:$0x3]
      %v270 = vld [vmem:[%s244 + $0x2] sm:$0x3]
      %v271 = vld [vmem:[%s244 + $0x4] sm:$0x3]
      %v272 = vld [vmem:[%s244 + $0x6] sm:$0x3]
      %v273 = vld [vmem:[%s252] sm:$0x3]
      %v274 = vld [vmem:[%s252 + $0x2] sm:$0x3]
      %v275 = vld [vmem:[%s252 + $0x4] sm:$0x3]
      %v276 = vld [vmem:[%s252 + $0x6] sm:$0x3]
      %v277 = vld [vmem:[%s259] sm:$0x3]
      %v278 = vstv %s268
      %v279 = vsub.f32 %v277, %v278
      %v280 = vmul.f32 %v279, 1.442695
      %v281 = vpow.pop %v280
      %v282 = vsub.f32 %v273, %v269
      %v283 = vsub.f32 %v274, %v270
      %v284 = vsub.f32 %v275, %v271
      %v285 = vsub.f32 %v276, %v272
      %v286 = vmul.f32 %v281, %v282
      %v287 = vmul.f32 %v281, %v283
      %v288 = vmul.f32 %v281, %v284
      %v289 = vmul.f32 %v281, %v285
      %v290 = vadd.f32 %v269, %v286
      %v291 = vadd.f32 %v270, %v287
      %v292 = vadd.f32 %v271, %v288
      %v293 = vadd.f32 %v272, %v289
      %294 = vst [vmem:[%s267] sm:$0x3] %v290
      %295 = vst [vmem:[%s267 + $0x2] sm:$0x3] %v291
      %296 = vst [vmem:[%s267 + $0x4] sm:$0x3] %v292
      %297 = vst [vmem:[%s267 + $0x6] sm:$0x3] %v293
      %p298 = scmp.lt.s32.totalorder %s25, 1
      %s299 = scalar_select %p298, %s25, 1
      %p300 = scmp.lt.s32.totalorder %s26, 0
      %s301 = scalar_select %p300, %s26, 0
      %s302 = smul.addr %s299, 4
      %s303 = sadd.s32 %s301, %s302
      %s304 = smul.addr %s303, 2
      %s305 = scalar_lea.vmem %s4, %s304
      // Predicated region
      $region33: #{template_matching.3} parent=31 // pred_check
        %p306 = pneg %p137
      $region34: #{template_matching.3} parent=31 // pred_check_branch
        %308 = sbr.rel (%p306) target = $region36
      $region35: #{template_matching.3} parent=31 // pred_region
        _
      $region36: #{template_matching.3} parent=31 // pred_fallthru
        _
    $region32: #{template_matching.3} parent=5 // pred_fallthru
      _
    %p309 = scmp.le.s32.totalorder 2, %s16
    // Predicated region
    $region37: #{template_matching.3} parent=5 // pred_check
      %p310 = pneg %p309
    $region38: #{template_matching.3} parent=5 // pred_check_branch
      %312 = sbr.rel (%p310) target = $region40
    $region39: #{template_matching.3} parent=5 // pred_region
      %s313 = ssub.s32 %s16, 2
      // Predicated region
      $region41: #{template_matching.3} parent=39 // pred_check
        %p314 = pneg %p143
      $region42: #{template_matching.3} parent=39 // pred_check_branch
        %316 = sbr.rel (%p314) target = $region44
      $region43: #{template_matching.3} parent=39 // pred_region
        %p317 = scmp.lt.s32.totalorder %s27, 1
        %s318 = scalar_select %p317, %s27, 1
        %p319 = scmp.lt.s32.totalorder %s28, 0
        %s320 = scalar_select %p319, %s28, 0
        %s321 = smul.addr %s318, 4
        %s322 = sadd.s32 %s320, %s321
        %s323 = smul.addr %s322, 2
        %s324 = scalar_lea.vmem %s4, %s323
      $region44: #{template_matching.3} parent=39 // pred_fallthru
        _
    $region40: #{template_matching.3} parent=5 // pred_fallthru
      _
  $region6: #{template_matching.3} parent=0 // loop_footer
    %s20 = sadd.s32 1, %s16
  $region7: #{template_matching.3} parent=0 // loop_footer_branch
    %15 = sbr.rel target = $region3
  $region8: #{template_matching.3} parent=0 // loop_exit
    _

</llo_original>
